<compile_context>
chip_gen: v7x
topology: tpu7x:2x2x1
jax: 0.10.0
libtpu: 0.0.40
codegen_flags: <defaults>
</compile_context>

<pallas_src>
import functools

import jax
import jax.numpy as jnp
from jax.experimental import pallas as pl
from jax.experimental.pallas import tpu as pltpu

_LANE = 128
_MIB = 1024 * 1024


def _round_up(v, m):
    return ((v + m - 1) // m) * m


def _sublane(dtype):
    # f32 -> 8 rows per vreg, 16-bit dtypes pack 2x.
    return 8 if jnp.dtype(dtype).itemsize == 4 else 16


def _vmem_budgets():
    """Generation-aware scoped-VMEM limit and allocation budget (bytes)."""
    try:
        cap = int(pltpu.get_tpu_info().vmem_capacity_bytes)
    except Exception:  # interpret mode / unknown chip: assume v7x per-core 64 MiB
        cap = 64 * _MIB
    vmem_limit = min(cap * 3 // 4, 112 * _MIB)       # v5e/v6e ~96 MiB, v7x ~48 MiB
    tile_budget = max(vmem_limit - 8 * _MIB, 16 * _MIB)  # headroom for Mosaic scratch
    return int(vmem_limit), int(tile_budget)


# ----------------------------------------------------------------------------
# Kernels
# ----------------------------------------------------------------------------
def _linear_kernel(x_ref, w_ref, b_ref, o_ref):
    # x_ref: (tile_n, in_feats), w_ref: (in_feats, Cp), b_ref: (1, Cp) f32
    acc = jnp.dot(x_ref[...], w_ref[...], preferred_element_type=jnp.float32)
    o_ref[...] = (acc + b_ref[...]).astype(o_ref.dtype)


def _linear_kernel_ktiled(x_ref, w_ref, b_ref, o_ref, acc_ref):
    # Grid = (row_tiles, k_tiles); K axis is "arbitrary" (reduction).
    k = pl.program_id(1)

    @pl.when(k == 0)
    def _():
        acc_ref[...] = jnp.zeros_like(acc_ref)

    acc_ref[...] += jnp.dot(x_ref[...], w_ref[...],
                            preferred_element_type=jnp.float32)

    @pl.when(k == pl.num_programs(1) - 1)
    def _():
        o_ref[...] = (acc_ref[...] + b_ref[...]).astype(o_ref.dtype)


# ----------------------------------------------------------------------------
# Tiling heuristics
# ----------------------------------------------------------------------------
def _choose_tile_k(in_feats, n_classes_p, in_bytes, weight_budget):
    """K (in_feats) tile; None => keep the whole weight resident in VMEM."""
    if 2 * in_feats * n_classes_p * in_bytes <= weight_budget:
        return None
    if in_feats % _LANE != 0:
        # TODO(synk): mask the K remainder in-kernel so non-128-multiple
        # in_feats can also use the K-tiled path; resident-weight fallback.
        return None
    max_k = (weight_budget // (2 * n_classes_p * in_bytes)) // _LANE * _LANE
    tile_k = max(_LANE, min(in_feats, max_k))
    while in_feats % tile_k != 0:     # exact K blocks -> no masked reduction
        tile_k -= _LANE
    return int(tile_k)


def _choose_tile_n(k_block, n_classes_p, in_bytes, out_bytes, sublane,
                   tile_budget, ktiled):
    """Largest sublane-aligned row tile fitting the VMEM budget."""
    # Weight AND bias counted twice: Pallas allocates 2 buffers per input by
    # default even when the index_map is constant (perf-review fix).
    weight_bytes = 2 * (k_block * n_classes_p * in_bytes + n_classes_p * 4)
    avail = max(tile_budget - weight_bytes, 1 * _MIB)
    per_row = 2 * k_block * in_bytes + 2 * n_classes_p * out_bytes
    if ktiled:
        per_row += n_classes_p * 4    # f32 accumulator scratch (single buffer)
    tile = avail // per_row
    return int(max(sublane, (tile // sublane) * sublane))


# ----------------------------------------------------------------------------
# Forward wrapper
# ----------------------------------------------------------------------------
@functools.partial(jax.jit, static_argnames=("tile_n", "tile_k", "trim_to"))
def classifier_forward(x, w_t, b, *, tile_n=None, tile_k=None, trim_to=None):
    """y = x @ w_t + b (nn.Linear forward) as a Pallas TPU kernel.

    x:   (N, in_feats)         -- stored dtype is used as-is (store bf16
                                  upstream to halve HBM reads; no per-call cast)
    w_t: (in_feats, C)         -- PyTorch weight transposed; ideally already
                                  lane-padded to a multiple of 128 classes
    b:   (C,) or (1, C)        -- bias (padded or not); added in f32
    trim_to: optionally slice the class axis back to this many columns
             (adds an extra HBM pass; prefer consuming the padded output).

    Returns (N, C_padded) logits; columns past the real class count are exact
    zeros (zero weight columns, zero bias).
    """
    N, in_feats = x.shape
    out_dtype = x.dtype
    in_bytes = jnp.dtype(x.dtype).itemsize
    out_bytes = jnp.dtype(out_dtype).itemsize
    sublane = _sublane(x.dtype)

    # Lane-dense output: class axis padded to a multiple of 128 (unmasked vst).
    # No-op when params were pre-padded by init_classifier_params.
    n_classes = w_t.shape[1]
    n_classes_p = _round_up(n_classes, _LANE)
    if n_classes_p != n_classes:
        w_t = jnp.pad(w_t, ((0, 0), (0, n_classes_p - n_classes)))
    b32 = jnp.reshape(b, (1, -1)).astype(jnp.float32)
    if b32.shape[1] != n_classes_p:
        b32 = jnp.pad(b32, ((0, 0), (0, n_classes_p - b32.shape[1])))

    vmem_limit, tile_budget = _vmem_budgets()

    # --- K tiling only when the (double-buffered) weight would blow VMEM ----
    if tile_k is None:
        tile_k = _choose_tile_k(in_feats, n_classes_p, in_bytes, tile_budget // 2)
    elif tile_k >= in_feats:
        tile_k = None
    if tile_k is not None and (in_feats % tile_k or tile_k % _LANE):
        raise ValueError(f"tile_k={tile_k} must be a multiple of {_LANE} that "
                         f"divides in_feats={in_feats}")
    ktiled = tile_k is not None
    k_block = tile_k if ktiled else in_feats

    # --- Row tile: big (amortize per-step overhead) but >=4 grid steps -------
    if tile_n is None:
        tile_n = _choose_tile_n(k_block, n_classes_p, in_bytes, out_bytes,
                                sublane, tile_budget, ktiled)
        if N >= 4 * sublane:
            # Guarantee >=4 row steps so v7x megacore + DMA pipeline are used.
            tile_n = min(tile_n, max(sublane, (N // 4) // sublane * sublane))
        if tile_n >= N:
            tile_n = N                      # tiny input: one full-extent block
        else:
            steps = -(-N // tile_n)
            if steps % 2:                   # best-effort even step count (v7x)
                cand = max(sublane, _round_up(-(-N // (steps + 1)), sublane))
                if cand < N and -(-N // cand) % 2 == 0:
                    tile_n = cand
    else:
        if tile_n != N and tile_n % sublane != 0:
            raise ValueError(f"tile_n={tile_n} must be a multiple of {sublane} "
                             f"for dtype {x.dtype} (or equal to N={N})")
        tile_n = min(tile_n, N)

    w_reads = pl.cdiv(N, tile_n) if ktiled else 1
    cost = pl.CostEstimate(
        flops=2 * N * in_feats * n_classes_p,
        transcendentals=0,
        bytes_accessed=(N * in_feats * in_bytes
                        + w_reads * in_feats * n_classes_p * in_bytes
                        + n_classes_p * 4
                        + N * n_classes_p * out_bytes),
    )
    cparams = pltpu.CompilerParams(
        dimension_semantics=(("parallel", "arbitrary") if ktiled
                             else ("parallel",)),
        vmem_limit_bytes=vmem_limit,
    )

    if ktiled:
        grid_spec = pltpu.PrefetchScalarGridSpec(
            num_scalar_prefetch=0,
            grid=(pl.cdiv(N, tile_n), in_feats // tile_k),
            in_specs=[
                pl.BlockSpec((tile_n, tile_k), lambda i, k: (i, k)),
                pl.BlockSpec((tile_k, n_classes_p), lambda i, k: (k, 0)),
                pl.BlockSpec((1, n_classes_p), lambda i, k: (0, 0)),
            ],
            out_specs=pl.BlockSpec((tile_n, n_classes_p), lambda i, k: (i, 0)),
            scratch_shapes=[pltpu.VMEM((tile_n, n_classes_p), jnp.float32)],
        )
        kernel = _linear_kernel_ktiled
    else:
        grid_spec = pltpu.PrefetchScalarGridSpec(
            num_scalar_prefetch=0,
            grid=(pl.cdiv(N, tile_n),),
            in_specs=[
                pl.BlockSpec((tile_n, in_feats), lambda i: (i, 0)),
                pl.BlockSpec((in_feats, n_classes_p), lambda i: (0, 0)),
                pl.BlockSpec((1, n_classes_p), lambda i: (0, 0)),
            ],
            out_specs=pl.BlockSpec((tile_n, n_classes_p), lambda i: (i, 0)),
        )
        kernel = _linear_kernel

    out = pl.pallas_call(
        kernel,
        out_shape=jax.ShapeDtypeStruct((N, n_classes_p), out_dtype),
        grid_spec=grid_spec,
        compiler_params=cparams,
        cost_estimate=cost,
    )(x, w_t, b32)

    return out[:, :trim_to] if trim_to is not None else out


def init_classifier_params(key, in_feats, n_classes, dtype=jnp.float32,
                           pad_classes=True):
    """Mirror nn.Linear.reset_parameters(): weight, bias ~ U(-1/sqrt(K), 1/sqrt(K)).
    Returns (w_t, b) with w_t = W^T of shape (in_feats, C[_padded]) and
    b of shape (1, C[_padded]) in f32. Padding once here keeps the per-call
    forward pad-free."""
    kw, kb = jax.random.split(key)
    bound = 1.0 / float(in_feats) ** 0.5
    # PyTorch stores weight as (n_classes, in_feats); we keep the transpose.
    w = jax.random.uniform(kw, (n_classes, in_feats), dtype, -bound, bound)
    b = jax.random.uniform(kb, (n_classes,), jnp.float32, -bound, bound)
    w_t = w.T
    b = b.reshape(1, n_classes)
    if pad_classes:
        n_classes_p = _round_up(n_classes, _LANE)
        if n_classes_p != n_classes:
            w_t = jnp.pad(w_t, ((0, 0), (0, n_classes_p - n_classes)))
            b = jnp.pad(b, ((0, 0), (0, n_classes_p - n_classes)))
    return w_t, b


if __name__ == "__main__":
    key = jax.random.PRNGKey(0)
    k_x, k_p, k_x2, k_p2, k_x3 = jax.random.split(key, 5)

    # Small shapes consistent with the module: N nodes, in_feats, n_classes.
    N, in_feats, n_classes = 8, 32, 16
    x = jax.random.normal(k_x, (N, in_feats), jnp.float32)
    w_t, b = init_classifier_params(k_p, in_feats, n_classes)   # pre-padded to 128
    n_classes_p = w_t.shape[1]

    # 1) Tiny input -> single full-extent block; padded lane-dense output.
    y = classifier_forward(x, w_t, b)
    jax.block_until_ready(y)
    y_ref = x @ w_t + b
    assert y.shape == (N, n_classes_p)
    assert jnp.allclose(y, y_ref, atol=1e-5, rtol=1e-5)
    assert bool(jnp.all(y[:, n_classes:] == 0))   # padded classes exact zeros

    # 2) Larger N: auto row tiling (>=4 steps, even) + partial last row block.
    N2 = 300
    x2 = jax.random.normal(k_x2, (N2, in_feats), jnp.float32)
    y2 = classifier_forward(x2, w_t, b)
    jax.block_until_ready(y2)
    y2_ref = x2 @ w_t + b
    assert jnp.allclose(y2, y2_ref, atol=1e-5, rtol=1e-5)

    # 2b) Explicit tile_n + trim_to (original (N, n_classes) shape).
    y2t = classifier_forward(x2, w_t, b, tile_n=128, trim_to=n_classes)
    jax.block_until_ready(y2t)
    assert y2t.shape == (N2, n_classes)
    assert jnp.allclose(y2t, y2_ref[:, :n_classes], atol=1e-5, rtol=1e-5)

    # 3) K-tiled path (forced with tile_k): f32 accumulator + pl.when flush.
    in_feats3 = 256
    w_t3, b3 = init_classifier_params(k_p2, in_feats3, n_classes)
    x3 = jax.random.normal(k_x3, (N2, in_feats3), jnp.float32)
    y3 = classifier_forward(x3, w_t3, b3, tile_k=128)
    jax.block_until_ready(y3)
    y3_ref = x3 @ w_t3 + b3
    assert jnp.allclose(y3, y3_ref, atol=1e-4, rtol=1e-4)

    # 4) bf16-stored inputs (no wrapper cast inside the forward), f32 accum.
    x3_bf = x3.astype(jnp.bfloat16)
    w_t3_bf = w_t3.astype(jnp.bfloat16)
    y4 = classifier_forward(x3_bf, w_t3_bf, b3)
    jax.block_until_ready(y4)
    y4_ref = x3_bf.astype(jnp.float32) @ w_t3_bf.astype(jnp.float32) + b3
    assert jnp.allclose(y4.astype(jnp.float32), y4_ref, atol=5e-2, rtol=5e-2)

    print("KERNEL_OK")
</pallas_src>

<mosaic_0001>
module attributes {stable_mosaic.version = 11 : i64} {
  func.func @_linear_kernel(%arg0: i32, %arg1: memref<8x32xf32, #tpu.memory_space<vmem>>, %arg2: memref<32x128xf32, #tpu.memory_space<vmem>>, %arg3: memref<1x128xf32, #tpu.memory_space<vmem>>, %arg4: memref<8x128xf32, #tpu.memory_space<vmem>>) attributes {dimension_semantics = [#tpu.dimension_semantics<parallel>], iteration_bounds = array<i64: 1>, scalar_prefetch = 0 : i64, scratch_operands = 0 : i64, tpu.core_type = #tpu.core_type<tc>, window_params = [{transform_indices = @transform_0, window_bounds = array<i64: 8, 32>}, {pipeline_mode = #tpu.pipeline_mode<synchronous>, transform_indices = @transform_1, window_bounds = array<i64: 32, 128>}, {pipeline_mode = #tpu.pipeline_mode<synchronous>, transform_indices = @transform_2, window_bounds = array<i64: 1, 128>}, {transform_indices = @transform_3, window_bounds = array<i64: 8, 128>}]} {
    %c0 = arith.constant 0 : index
    %c0_0 = arith.constant 0 : index
    %0 = vector.load %arg1[%c0, %c0_0] : memref<8x32xf32, #tpu.memory_space<vmem>>, vector<8x32xf32>
    %c0_1 = arith.constant 0 : index
    %c0_2 = arith.constant 0 : index
    %1 = vector.load %arg2[%c0_1, %c0_2] : memref<32x128xf32, #tpu.memory_space<vmem>>, vector<32x128xf32>
    %cst = arith.constant dense<0.000000e+00> : vector<8x128xf32>
    %2 = tpu.matmul %0, %1, %cst {dimension_numbers = #tpu.dot_dimension_numbers<[1], [0], [0], [1], [0, 0, 1, 1], [], []>} : vector<8x32xf32>, vector<32x128xf32>, vector<8x128xf32> -> vector<8x128xf32>
    %c0_3 = arith.constant 0 : index
    %c0_4 = arith.constant 0 : index
    %3 = vector.load %arg3[%c0_3, %c0_4] : memref<1x128xf32, #tpu.memory_space<vmem>>, vector<1x128xf32>
    %4 = vector.broadcast %3 : vector<1x128xf32> to vector<8x128xf32>
    %5 = arith.addf %2, %4 : vector<8x128xf32>
    %c0_5 = arith.constant 0 : index
    %c0_6 = arith.constant 0 : index
    %6 = vector.load %arg4[%c0_5, %c0_6] : memref<8x128xf32, #tpu.memory_space<vmem>>, vector<8x128xf32>
    tpu.vector_store %arg4[%c0_5, %c0_6], %5 {strides = array<i32>} : memref<8x128xf32, #tpu.memory_space<vmem>>, vector<8x128xf32>,
    return
  }
  func.func @transform_0(%arg0: i32) -> (i32, i32) {
    %c0_i32 = arith.constant 0 : i32
    %c0_i32_0 = arith.constant 0 : i32
    return %arg0, %c0_i32 : i32, i32
  }
  func.func @transform_1(%arg0: i32) -> (i32, i32) {
    %c0_i32 = arith.constant 0 : i32
    %c0_i32_0 = arith.constant 0 : i32
    %c0_i32_1 = arith.constant 0 : i32
    return %c0_i32, %c0_i32_0 : i32, i32
  }
  func.func @transform_2(%arg0: i32) -> (i32, i32) {
    %c0_i32 = arith.constant 0 : i32
    %c0_i32_0 = arith.constant 0 : i32
    %c0_i32_1 = arith.constant 0 : i32
    return %c0_i32, %c0_i32_0 : i32, i32
  }
  func.func @transform_3(%arg0: i32) -> (i32, i32) {
    %c0_i32 = arith.constant 0 : i32
    %c0_i32_0 = arith.constant 0 : i32
    return %arg0, %c0_i32 : i32, i32
  }
}

</mosaic_0001>

<llo_original>
// kernel: classifier_forward.1
$region0: #{classifier_forward.1}
  #allocation0 [shape = 'u32[]', space=smem, size = 0x4, offset = 0x4, fixed_abs, tag = 'smem constant byte address 0x4 - core index']
  #allocation1 [shape = 'u32[144,128]{1,0:T(1,128)}', space=vmem, size = 0x12000, scoped, tag = 'internal scratch']
  %s0 = inlined_call_operand.hbm [shape: f32[8,32], index: 0, kind: input, shape index: {}]
  %s1 = inlined_call_operand.hbm [shape: f32[32,128], index: 1, kind: input, shape index: {}]
  %s2 = inlined_call_operand.vmem [shape: f32[1,128], index: 2, kind: input, shape index: {}]
  %s3 = inlined_call_operand.hbm [shape: f32[8,128], index: 3, kind: output, shape index: {}]
  %s4 = sld [smem:[#allocation0]]
  $region30: #{classifier_forward.1} parent=0
    _
  %s6 = ssub.s32 1, %s4
  %s7 = scalar_select 0, %s6, %s4
  $region1: #{classifier_forward.1} parent=0
    #allocation2 [shape = 'u8[4096]{0}', space=vmem, size = 0x1000, scoped, tag = 'input window, operand 0, single buffered']
    #allocation3 [shape = 's32[1]{0}', space=sflag, size = 0x4, scoped, tag = 'scoped memory for classifier_forward.1']
    #allocation4 [shape = 's32[1]{0}', space=sflag, size = 0x4, scoped, tag = 'scoped memory for classifier_forward.1']
    #allocation5 [shape = 'u8[16384]{0}', space=vmem, size = 0x4000, scoped, tag = 'input window, operand 1, single buffered']
    #allocation6 [shape = 's32[1]{0}', space=sflag, size = 0x4, scoped, tag = 'scoped memory for classifier_forward.1']
    #allocation7 [shape = 'u8[4096]{0}', space=vmem, size = 0x1000, scoped, tag = 'output window, operand 0, single buffered']
    %8 = vsyncpa [#allocation3], 0
    %9 = vsyncpa [#allocation6], 0
    %10 = vsyncpa [#allocation4], 0
    // Predicated region
    $region2: #{classifier_forward.1} parent=1 // pred_check
      _
    $region3: #{classifier_forward.1} parent=1 // pred_check_branch
      %12 = sbr.rel (0) target = $region5
    $region4: #{classifier_forward.1} parent=1 // pred_region
      %s14 = ssub.s32 128, 128
      %15 = vsyncadd [#allocation3], %s14
      %s17 = sshll.u32 [#allocation2], 4
      %s18 = int_to_ptr.vmem [resolvable:$true] %s17
      %20 = dma.hbm_to_vmem [thread:$0]  %s0, 128, %s18, [#allocation3]
    $region5: #{classifier_forward.1} parent=1 // pred_fallthru
      _
    // Predicated region
    $region6: #{classifier_forward.1} parent=1 // pred_check
      _
    $region7: #{classifier_forward.1} parent=1 // pred_check_branch
      %22 = sbr.rel (0) target = $region9
    $region8: #{classifier_forward.1} parent=1 // pred_region
      %s24 = ssub.s32 512, 512
      %25 = vsyncadd [#allocation6], %s24
      %s26 = sshll.u32 [#allocation5], 4
      %s27 = int_to_ptr.vmem [resolvable:$true] %s26
      %32 = dma.hbm_to_vmem [thread:$0]  %s1, 512, %s27, [#allocation6], 128, 128, 8
    $region9: #{classifier_forward.1} parent=1 // pred_fallthru
      _
    // Predicated region
    $region10: #{classifier_forward.1} parent=1 // pred_check
      _
    $region11: #{classifier_forward.1} parent=1 // pred_check_branch
      %34 = sbr.rel (0) target = $region13
    $region12: #{classifier_forward.1} parent=1 // pred_region
      _
    $region13: #{classifier_forward.1} parent=1 // pred_fallthru
      _
    // Predicated region
    $region14: #{classifier_forward.1} parent=1 // pred_check
      _
    $region15: #{classifier_forward.1} parent=1 // pred_check_branch
      %36 = sbr.rel (0) target = $region17
    $region16: #{classifier_forward.1} parent=1 // pred_region
      %37 = dma.done [#allocation3], 128
    $region17: #{classifier_forward.1} parent=1 // pred_fallthru
      _
    // Predicated region
    $region18: #{classifier_forward.1} parent=1 // pred_check
      _
    $region19: #{classifier_forward.1} parent=1 // pred_check_branch
      %39 = sbr.rel (0) target = $region21
    $region20: #{classifier_forward.1} parent=1 // pred_region
      %40 = dma.done [#allocation6], 512
    $region21: #{classifier_forward.1} parent=1 // pred_fallthru
      _
    %v41 = vld [vmem:[#allocation2] sm:$0xff]
    %v42 = vld [vmem:[#allocation5] sm:$0xff]
    %v43 = vld [vmem:[#allocation5 + $0x8] sm:$0xff]
    %v44 = vld [vmem:[#allocation5 + $0x10] sm:$0xff]
    %v45 = vld [vmem:[#allocation5 + $0x18] sm:$0xff]
    %v46 = vld [vmem:[%s2] sm:$0x1]
    %v48 = vlaneseq
    %v49 = vshrl.u32 %v48, 7
    %v50 = vsub.s32 0, %v49
    %v51 = vrot.slane %v46, %v50
    %vm53 = vcmask 261120
    %v55 = vsel %vm53, %v41, 0
    %57 = vmatprep.subr.mxu0 0.0
    %58 = vmatpush1.msra.mxu0 %v42
    %59 = vmatprep.subr.mxu0 0.0
    %60 = vmatpush1.msra.mxu0 %v43
    %61 = vmatprep.subr.mxu0 0.0
    %62 = vmatpush1.msra.mxu0 %v44
    %63 = vmatprep.subr.mxu0 0.0
    %64 = vmatpush1.msra.mxu0 %v45
    %65 = vmatprep.subr.mxu0 0.0
    %66 = vmatpush1.msra.mxu0 0.0
    %67 = vmatprep.subr.mxu0 0.0
    %68 = vmatpush1.msra.mxu0 0.0
    %69 = vmatprep.subr.mxu0 0.0
    %70 = vmatpush1.msra.mxu0 0.0
    %71 = vmatprep.subr.mxu0 0.0
    %72 = vmatpush1.msra.mxu0 0.0
    %73 = vmatprep.subr.mxu0 0.0
    %74 = vmatpush1.msra.mxu0 0.0
    %75 = vmatprep.subr.mxu0 0.0
    %76 = vmatpush1.msra.mxu0 0.0
    %77 = vmatprep.subr.mxu0 0.0
    %78 = vmatpush1.msra.mxu0 0.0
    %79 = vmatprep.subr.mxu0 0.0
    %80 = vmatpush1.msra.mxu0 0.0
    %81 = vmatprep.subr.mxu0 0.0
    %82 = vmatpush1.msra.mxu0 0.0
    %83 = vmatprep.subr.mxu0 0.0
    %84 = vmatpush1.msra.mxu0 0.0
    %85 = vmatprep.subr.mxu0 0.0
    %86 = vmatpush1.msra.mxu0 0.0
    %87 = vmatprep.subr.mxu0 0.0
    %88 = vmatpush1.msra.mxu0 0.0
    %89 = vmatprep.subr.mxu0 0.0
    %90 = vmatpush1.msra.mxu0 0.0
    %91 = vmatprep.subr.mxu0 0.0
    %92 = vmatpush1.msra.mxu0 0.0
    %93 = vmatprep.subr.mxu0 0.0
    %94 = vmatpush1.msra.mxu0 0.0
    %95 = vmatprep.subr.mxu0 0.0
    %96 = vmatpush1.msra.mxu0 0.0
    %97 = vmatprep.subr.mxu0 0.0
    %98 = vmatpush1.msra.mxu0 0.0
    %99 = vmatprep.subr.mxu0 0.0
    %100 = vmatpush1.msra.mxu0 0.0
    %101 = vmatprep.subr.mxu0 0.0
    %102 = vmatpush1.msra.mxu0 0.0
    %103 = vmatprep.subr.mxu0 0.0
    %104 = vmatpush1.msra.mxu0 0.0
    %105 = vmatprep.subr.mxu0 0.0
    %106 = vmatpush1.msra.mxu0 0.0
    %107 = vmatprep.subr.mxu0 0.0
    %108 = vmatpush1.msra.mxu0 0.0
    %109 = vmatprep.subr.mxu0 0.0
    %110 = vmatpush1.msra.mxu0 0.0
    %111 = vmatprep.subr.mxu0 0.0
    %112 = vmatpush1.msra.mxu0 0.0
    %113 = vmatprep.subr.mxu0 0.0
    %114 = vmatpush1.msra.mxu0 0.0
    %115 = vmatprep.subr.mxu0 0.0
    %116 = vmatpush1.msra.mxu0 0.0
    %117 = vmatprep.subr.mxu0 0.0
    %118 = vmatpush1.msra.mxu0 0.0
    %119 = vmatprep.subr.mxu0 0.0
    %120 = vmatpush1.msra.mxu0 0.0
    %121 = vmatprep.mubr.f32.mxu0 0.0
    %122 = vmatmul.mubr.f32.gmra.mrb[0].mxu0 %v55
    %v123 = vpop.f32.mrb[0].mxu0
    %v124 = vadd.f32 %v51, %v123
    %v125 = vpop.f32.mrb[0].mxu0
    %126 = vdwg.mxu0
    %127 = vst [vmem:[#allocation7] sm:$0xff] %v124
    // Predicated region
    $region22: #{classifier_forward.1} parent=1 // pred_check
      _
    $region23: #{classifier_forward.1} parent=1 // pred_check_branch
      %129 = sbr.rel (0) target = $region25
    $region24: #{classifier_forward.1} parent=1 // pred_region
      %s131 = ssub.s32 128, 128
      %132 = vsyncadd [#allocation4], %s131
      %s134 = sshll.u32 [#allocation7], 4
      %s135 = int_to_ptr.vmem [resolvable:$true] %s134
      %137 = dma.vmem_to_hbm [thread:$0]  %s135, 128, %s3, [#allocation4]
    $region25: #{classifier_forward.1} parent=1 // pred_fallthru
      _
    // Predicated region
    $region26: #{classifier_forward.1} parent=1 // pred_check
      _
    $region27: #{classifier_forward.1} parent=1 // pred_check_branch
      %139 = sbr.rel (0) target = $region29
    $region28: #{classifier_forward.1} parent=1 // pred_region
      %140 = dma.done [#allocation4], 128
    $region29: #{classifier_forward.1} parent=1 // pred_fallthru
      _
    %141 = vsyncpa [#allocation3], 1
    %142 = vsyncpa [#allocation6], 1
    %143 = vsyncpa [#allocation4], 1

</llo_original>
